<compile_context>
chip_gen: v7x
topology: tpu7x:2x2x1
jax: 0.10.0
libtpu: 0.0.40
codegen_flags: <defaults>
</compile_context>

<pallas_src>
import jax
import jax.numpy as jnp
from jax.experimental import pallas as pl
from jax.experimental.pallas import tpu as pltpu


def _round_up(x, m):
    return ((x + m - 1) // m) * m


# ----------------------------------------------------------------------------
# Pallas kernel 1: fused detection heads (lane-dense, bf16 MXU inputs)
#   pred_logits = x @ Wc + bc                         (output padded to 128)
#   pred_boxes  = sigmoid(MLP(x))                     (output padded to 128)
#   MLP = Lin -> ReLU -> Lin -> ReLU -> Lin
# ----------------------------------------------------------------------------
def _heads_kernel(x_ref, wc_ref, bc_ref, w1_ref, b1_ref, w2_ref, b2_ref,
                  w3_ref, b3_ref, logits_ref, boxes_ref):
    x = x_ref[...]                                               # [tile_t, H] bf16
    # classification head: Linear(hidden, num_classes + 1), padded to 128 lanes
    logits_ref[...] = (
        jnp.dot(x, wc_ref[...], preferred_element_type=jnp.float32)
        + bc_ref[...])
    # bbox regression head: 3-layer MLP (f32 activations, bf16 matmul inputs)
    h = jnp.maximum(
        jnp.dot(x, w1_ref[...], preferred_element_type=jnp.float32)
        + b1_ref[...], 0.0)
    h = jnp.maximum(
        jnp.dot(h.astype(jnp.bfloat16), w2_ref[...],
                preferred_element_type=jnp.float32)
        + b2_ref[...], 0.0)
    b = (jnp.dot(h.astype(jnp.bfloat16), w3_ref[...],
                 preferred_element_type=jnp.float32)
         + b3_ref[...])
    boxes_ref[...] = jax.nn.sigmoid(b)


def detection_heads(x, wc, bc, w1, b1, w2, b2, w3, b3):
    T, H = x.shape
    hidden = w1.shape[1]
    n_cls = wc.shape[1]
    n_box = w3.shape[1]
    OUT_W = 128  # lane-dense output width

    # --- lane-dense padding of the narrow output projections -----------------
    wc_p = jnp.zeros((H, OUT_W), jnp.bfloat16).at[:, :n_cls].set(
        wc.astype(jnp.bfloat16))
    bc_p = jnp.zeros((1, OUT_W), jnp.float32).at[:, :n_cls].set(bc)
    w3_p = jnp.zeros((hidden, OUT_W), jnp.bfloat16).at[:, :n_box].set(
        w3.astype(jnp.bfloat16))
    b3_p = jnp.zeros((1, OUT_W), jnp.float32).at[:, :n_box].set(b3)

    # --- tile selection: big tiles, but keep >=2 grid steps for v7x megacore --
    if T <= 256:
        tile_t = max(8, _round_up(T, 16) // 2)
    else:
        tile_t = 128
    T_pad = _round_up(T, tile_t)
    n_tiles = T_pad // tile_t

    x_p = x.astype(jnp.bfloat16)
    if T_pad != T:
        x_p = jnp.pad(x_p, ((0, T_pad - T), (0, 0)))

    mac = H * OUT_W + H * hidden + hidden * hidden + hidden * OUT_W
    ce = pl.CostEstimate(
        flops=2 * T_pad * mac,
        transcendentals=T_pad * OUT_W,
        bytes_accessed=(T_pad * H * 2 + mac * 2
                        + (2 * OUT_W + 2 * hidden) * 4
                        + 2 * T_pad * OUT_W * 4))

    logits_p, boxes_p = pl.pallas_call(
        _heads_kernel,
        out_shape=(jax.ShapeDtypeStruct((T_pad, OUT_W), jnp.float32),
                   jax.ShapeDtypeStruct((T_pad, OUT_W), jnp.float32)),
        grid=(n_tiles,),
        in_specs=[pl.BlockSpec((tile_t, H), lambda i: (i, 0)),
                  pl.BlockSpec((H, OUT_W), lambda i: (0, 0)),
                  pl.BlockSpec((1, OUT_W), lambda i: (0, 0)),
                  pl.BlockSpec((H, hidden), lambda i: (0, 0)),
                  pl.BlockSpec((1, hidden), lambda i: (0, 0)),
                  pl.BlockSpec((hidden, hidden), lambda i: (0, 0)),
                  pl.BlockSpec((1, hidden), lambda i: (0, 0)),
                  pl.BlockSpec((hidden, OUT_W), lambda i: (0, 0)),
                  pl.BlockSpec((1, OUT_W), lambda i: (0, 0))],
        out_specs=(pl.BlockSpec((tile_t, OUT_W), lambda i: (i, 0)),
                   pl.BlockSpec((tile_t, OUT_W), lambda i: (i, 0))),
        compiler_params=pltpu.CompilerParams(
            dimension_semantics=("parallel",)),
        cost_estimate=ce,
    )(x_p, wc_p, bc_p, w1.astype(jnp.bfloat16), b1,
      w2.astype(jnp.bfloat16), b2, w3_p, b3_p)

    return logits_p[:T, :n_cls], boxes_p[:T, :n_box]


# ----------------------------------------------------------------------------
# Pallas kernel 2: seg head = 1x1x1 Conv3d as a lane-dense VPU reduction.
#   Input stays NCDHW; spatial (D*H*W) is flattened onto the lane axis, and
#   the conv is an unrolled sum over Cin of scalar (SMEM) * vector products:
#     o[b, cout, s] = sum_c w[c, cout] * x[b, c, s] + b[cout]
# ----------------------------------------------------------------------------
def _seg_kernel(x_ref, w_ref, b_ref, o_ref):
    cin = x_ref.shape[1]
    cout = o_ref.shape[1]
    x = x_ref[...]                                   # (1, Cin, tile_s) f32
    rows = []
    for co in range(cout):
        acc = x[:, 0:1, :] * w_ref[0, co] + b_ref[co]
        for c in range(1, cin):
            acc = acc + x[:, c:c + 1, :] * w_ref[c, co]
        rows.append(acc)
    o_ref[...] = jnp.concatenate(rows, axis=1)       # (1, Cout, tile_s)


def seg_head_pointwise(x, w, b, *, max_tile_s=8192):
    """x: [B, Cin, D, H, W] (NCDHW), w: [Cin, Cout], b: [Cout] -> NCDHW out."""
    B, Cin, D, Hh, W = x.shape
    Cout = w.shape[1]
    S = D * Hh * W
    x_flat = x.reshape(B, Cin, S)

    tile_s = min(max_tile_s, _round_up(S, 128))
    S_pad = pl.cdiv(S, tile_s) * tile_s
    if S_pad != S:
        x_flat = jnp.pad(x_flat, ((0, 0), (0, 0), (0, S_pad - S)))
    n_s_tiles = S_pad // tile_s

    ce = pl.CostEstimate(
        flops=2 * B * S_pad * Cin * Cout,
        transcendentals=0,
        bytes_accessed=B * S_pad * (Cin + Cout) * 4 + (Cin * Cout + Cout) * 4)

    out = pl.pallas_call(
        _seg_kernel,
        out_shape=jax.ShapeDtypeStruct((B, Cout, S_pad), jnp.float32),
        grid=(B, n_s_tiles),
        in_specs=[pl.BlockSpec((1, Cin, tile_s), lambda bi, si: (bi, 0, si)),
                  pl.BlockSpec(memory_space=pltpu.MemorySpace.SMEM),
                  pl.BlockSpec(memory_space=pltpu.MemorySpace.SMEM)],
        out_specs=pl.BlockSpec((1, Cout, tile_s), lambda bi, si: (bi, 0, si)),
        compiler_params=pltpu.CompilerParams(
            dimension_semantics=("parallel", "parallel")),
        cost_estimate=ce,
    )(x_flat, w, b)

    return out[:, :, :S].reshape(B, Cout, D, Hh, W)


# ----------------------------------------------------------------------------
# Parameter init (deterministic, mirrors the nn.Module __init__ shapes)
# ----------------------------------------------------------------------------
def init_params(key, config):
    hidden = config['neck']['hidden_dim']
    num_queries = config['neck']['num_queries']
    num_classes = config['num_classes']
    in_ch = config['backbone']['start_channels']
    out_ch = (2 if config['backbone']['fg_bg']
              else config['neck']['num_organs'] + 1)

    ks = jax.random.split(key, 8)

    def lin(k, n_in, n_out):
        return (jax.random.normal(k, (n_in, n_out), jnp.float32) * 0.1,
                jnp.zeros((1, n_out), jnp.float32))

    wc, bc = lin(ks[0], hidden, num_classes + 1)        # _cls_head
    w1, b1 = lin(ks[1], hidden, hidden)                 # _bbox_reg_head layer 0
    w2, b2 = lin(ks[2], hidden, hidden)                 # _bbox_reg_head layer 1
    w3, b3 = lin(ks[3], hidden, 6)                      # _bbox_reg_head layer 2
    w_seg = jax.random.normal(ks[4], (in_ch, out_ch), jnp.float32) * 0.1
    b_seg = jnp.zeros((out_ch,), jnp.float32)           # _seg_head (1x1x1 conv)
    query_embed = jax.random.normal(
        ks[5], (num_queries, hidden), jnp.float32)      # _query_embed.weight

    return dict(wc=wc, bc=bc, w1=w1, b1=b1, w2=w2, b2=b2, w3=w3, b3=b3,
                w_seg=w_seg, b_seg=b_seg, query_embed=query_embed)


# ----------------------------------------------------------------------------
# TransoarNet.forward
# ----------------------------------------------------------------------------
def transoar_forward(x, params, config):
    # TODO(synk): build_backbone definition not provided in the reference; the
    # stand-in backbone returns the input volume as both P0 and det_src.
    out_backbone = {'P0': x, config['neck']['input_level']: x}
    seg_proxy = config['backbone']['use_seg_proxy_loss']
    seg_src = out_backbone['P0'] if seg_proxy else 0
    det_src = out_backbone[config['neck']['input_level']]

    # mask = torch.zeros_like(det_src[:, 0], dtype=torch.bool)
    mask = jnp.zeros_like(det_src[:, 0], dtype=jnp.bool_)        # [B, D, H, W]
    # TODO(synk): build_pos_enc definition not provided; zero positional enc.
    pos = jnp.zeros_like(det_src)
    del mask, pos  # consumed only by the (unavailable) neck transformer

    # TODO(synk): build_neck (DETR transformer) definition not provided; the
    # stand-in broadcasts the query embeddings over decoder layers/batch and
    # mixes in a global feature so the heads see data-dependent tokens.
    L = config['neck']['num_decoder_layers']
    B = det_src.shape[0]
    Q, H = params['query_embed'].shape
    feat = jnp.mean(det_src.reshape(B, -1), axis=-1)             # [B]
    out_neck = (params['query_embed'][None, None]
                + feat[None, :, None, None]
                + jnp.arange(L, dtype=jnp.float32)[:, None, None, None] * 0.01)
    out_neck = out_neck.astype(jnp.float32)                      # [L, B, Q, H]

    # --- detection heads (Pallas, fused, lane-dense outputs) ---
    tokens = out_neck.reshape(L * B * Q, H)
    logits_flat, boxes_flat = detection_heads(
        tokens, params['wc'], params['bc'], params['w1'], params['b1'],
        params['w2'], params['b2'], params['w3'], params['b3'])
    pred_logits = logits_flat.reshape(L, B, Q, -1)
    pred_boxes = boxes_flat.reshape(L, B, Q, 6)

    # --- seg head: 1x1x1 Conv3d as lane-dense VPU reduction (Pallas) ---
    if seg_proxy:
        pred_seg = seg_head_pointwise(
            seg_src, params['w_seg'], params['b_seg'])           # NCDHW
    else:
        pred_seg = 0

    out = {'pred_logits': pred_logits[-1],
           'pred_boxes': pred_boxes[-1],
           'pred_seg': pred_seg}
    if config['neck']['aux_loss']:
        out['aux_outputs'] = [
            {'pred_logits': a, 'pred_boxes': b}
            for a, b in zip(pred_logits[:-1], pred_boxes[:-1])]
    return out


# ----------------------------------------------------------------------------
if __name__ == "__main__":
    config = {
        'num_classes': 4,
        'backbone': {
            'use_seg_proxy_loss': True,
            'fg_bg': False,
            'start_channels': 4,
        },
        'neck': {
            'hidden_dim': 32,
            'num_queries': 8,
            'input_level': 'P2',
            'aux_loss': True,
            'num_organs': 2,
            'num_decoder_layers': 2,
        },
    }

    key = jax.random.PRNGKey(0)
    k_x, k_p = jax.random.split(key)
    # input volume, NCDHW (PyTorch Conv3d convention): [B, C, D, H, W]
    x = jax.random.normal(k_x, (2, 4, 4, 8, 8), jnp.float32)
    params = init_params(k_p, config)

    out = transoar_forward(x, params, config)
    jax.block_until_ready(out['pred_logits'])
    jax.block_until_ready(out['pred_boxes'])
    jax.block_until_ready(out['pred_seg'])

    assert out['pred_logits'].shape == (2, 8, config['num_classes'] + 1)
    assert out['pred_boxes'].shape == (2, 8, 6)
    assert out['pred_seg'].shape == (2, 3, 4, 8, 8)
    assert len(out['aux_outputs']) == config['neck']['num_decoder_layers'] - 1
    assert bool(jnp.all(out['pred_boxes'] >= 0) & jnp.all(out['pred_boxes'] <= 1))

    print("KERNEL_OK")
</pallas_src>

<mosaic_0001>
module attributes {stable_mosaic.version = 11 : i64} {
  func.func @_heads_kernel(%arg0: i32, %arg1: memref<16x32xbf16, #tpu.memory_space<vmem>>, %arg2: memref<32x128xbf16, #tpu.memory_space<vmem>>, %arg3: memref<1x128xf32, #tpu.memory_space<vmem>>, %arg4: memref<32x32xbf16, #tpu.memory_space<vmem>>, %arg5: memref<1x32xf32, #tpu.memory_space<vmem>>, %arg6: memref<32x32xbf16, #tpu.memory_space<vmem>>, %arg7: memref<1x32xf32, #tpu.memory_space<vmem>>, %arg8: memref<32x128xbf16, #tpu.memory_space<vmem>>, %arg9: memref<1x128xf32, #tpu.memory_space<vmem>>, %arg10: memref<16x128xf32, #tpu.memory_space<vmem>>, %arg11: memref<16x128xf32, #tpu.memory_space<vmem>>) attributes {dimension_semantics = [#tpu.dimension_semantics<parallel>], iteration_bounds = array<i64: 2>, scalar_prefetch = 0 : i64, scratch_operands = 0 : i64, tpu.core_type = #tpu.core_type<tc>, window_params = [{transform_indices = @transform_0, window_bounds = array<i64: 16, 32>}, {pipeline_mode = #tpu.pipeline_mode<synchronous>, transform_indices = @transform_1, window_bounds = array<i64: 32, 128>}, {pipeline_mode = #tpu.pipeline_mode<synchronous>, transform_indices = @transform_2, window_bounds = array<i64: 1, 128>}, {pipeline_mode = #tpu.pipeline_mode<synchronous>, transform_indices = @transform_3, window_bounds = array<i64: 32, 32>}, {pipeline_mode = #tpu.pipeline_mode<synchronous>, transform_indices = @transform_4, window_bounds = array<i64: 1, 32>}, {pipeline_mode = #tpu.pipeline_mode<synchronous>, transform_indices = @transform_5, window_bounds = array<i64: 32, 32>}, {pipeline_mode = #tpu.pipeline_mode<synchronous>, transform_indices = @transform_6, window_bounds = array<i64: 1, 32>}, {pipeline_mode = #tpu.pipeline_mode<synchronous>, transform_indices = @transform_7, window_bounds = array<i64: 32, 128>}, {pipeline_mode = #tpu.pipeline_mode<synchronous>, transform_indices = @transform_8, window_bounds = array<i64: 1, 128>}, {transform_indices = @transform_9, window_bounds = array<i64: 16, 128>}, {transform_indices = @transform_10, window_bounds = array<i64: 16, 128>}]} {
    %c0 = arith.constant 0 : index
    %c0_0 = arith.constant 0 : index
    %0 = vector.load %arg1[%c0, %c0_0] : memref<16x32xbf16, #tpu.memory_space<vmem>>, vector<16x32xbf16>
    %c0_1 = arith.constant 0 : index
    %c0_2 = arith.constant 0 : index
    %1 = vector.load %arg2[%c0_1, %c0_2] : memref<32x128xbf16, #tpu.memory_space<vmem>>, vector<32x128xbf16>
    %cst = arith.constant dense<0.000000e+00> : vector<16x128xf32>
    %2 = tpu.matmul %0, %1, %cst {dimension_numbers = #tpu.dot_dimension_numbers<[1], [0], [0], [1], [0, 0, 1, 1], [], []>} : vector<16x32xbf16>, vector<32x128xbf16>, vector<16x128xf32> -> vector<16x128xf32>
    %c0_3 = arith.constant 0 : index
    %c0_4 = arith.constant 0 : index
    %3 = vector.load %arg3[%c0_3, %c0_4] : memref<1x128xf32, #tpu.memory_space<vmem>>, vector<1x128xf32>
    %4 = vector.broadcast %3 : vector<1x128xf32> to vector<16x128xf32>
    %5 = arith.addf %2, %4 : vector<16x128xf32>
    %c0_5 = arith.constant 0 : index
    %c0_6 = arith.constant 0 : index
    %6 = vector.load %arg10[%c0_5, %c0_6] : memref<16x128xf32, #tpu.memory_space<vmem>>, vector<16x128xf32>
    tpu.vector_store %arg10[%c0_5, %c0_6], %5 {strides = array<i32>} : memref<16x128xf32, #tpu.memory_space<vmem>>, vector<16x128xf32>,
    %c0_7 = arith.constant 0 : index
    %c0_8 = arith.constant 0 : index
    %7 = vector.load %arg4[%c0_7, %c0_8] : memref<32x32xbf16, #tpu.memory_space<vmem>>, vector<32x32xbf16>
    %cst_9 = arith.constant dense<0.000000e+00> : vector<16x32xf32>
    %8 = tpu.matmul %0, %7, %cst_9 {dimension_numbers = #tpu.dot_dimension_numbers<[1], [0], [0], [1], [0, 0, 1, 1], [], []>} : vector<16x32xbf16>, vector<32x32xbf16>, vector<16x32xf32> -> vector<16x32xf32>
    %c0_10 = arith.constant 0 : index
    %c0_11 = arith.constant 0 : index
    %9 = vector.load %arg5[%c0_10, %c0_11] : memref<1x32xf32, #tpu.memory_space<vmem>>, vector<1x32xf32>
    %10 = vector.broadcast %9 : vector<1x32xf32> to vector<16x32xf32>
    %11 = arith.addf %8, %10 : vector<16x32xf32>
    %cst_12 = arith.constant 0.000000e+00 : f32
    %12 = vector.broadcast %cst_12 : f32 to vector<16x32xf32>
    %13 = arith.maximumf %11, %12 : vector<16x32xf32>
    %14 = arith.truncf %13 : vector<16x32xf32> to vector<16x32xbf16>
    %c0_13 = arith.constant 0 : index
    %c0_14 = arith.constant 0 : index
    %15 = vector.load %arg6[%c0_13, %c0_14] : memref<32x32xbf16, #tpu.memory_space<vmem>>, vector<32x32xbf16>
    %cst_15 = arith.constant dense<0.000000e+00> : vector<16x32xf32>
    %16 = tpu.matmul %14, %15, %cst_15 {dimension_numbers = #tpu.dot_dimension_numbers<[1], [0], [0], [1], [0, 0, 1, 1], [], []>} : vector<16x32xbf16>, vector<32x32xbf16>, vector<16x32xf32> -> vector<16x32xf32>
    %c0_16 = arith.constant 0 : index
    %c0_17 = arith.constant 0 : index
    %17 = vector.load %arg7[%c0_16, %c0_17] : memref<1x32xf32, #tpu.memory_space<vmem>>, vector<1x32xf32>
    %18 = vector.broadcast %17 : vector<1x32xf32> to vector<16x32xf32>
    %19 = arith.addf %16, %18 : vector<16x32xf32>
    %cst_18 = arith.constant 0.000000e+00 : f32
    %20 = vector.broadcast %cst_18 : f32 to vector<16x32xf32>
    %21 = arith.maximumf %19, %20 : vector<16x32xf32>
    %22 = arith.truncf %21 : vector<16x32xf32> to vector<16x32xbf16>
    %c0_19 = arith.constant 0 : index
    %c0_20 = arith.constant 0 : index
    %23 = vector.load %arg8[%c0_19, %c0_20] : memref<32x128xbf16, #tpu.memory_space<vmem>>, vector<32x128xbf16>
    %cst_21 = arith.constant dense<0.000000e+00> : vector<16x128xf32>
    %24 = tpu.matmul %22, %23, %cst_21 {dimension_numbers = #tpu.dot_dimension_numbers<[1], [0], [0], [1], [0, 0, 1, 1], [], []>} : vector<16x32xbf16>, vector<32x128xbf16>, vector<16x128xf32> -> vector<16x128xf32>
    %c0_22 = arith.constant 0 : index
    %c0_23 = arith.constant 0 : index
    %25 = vector.load %arg9[%c0_22, %c0_23] : memref<1x128xf32, #tpu.memory_space<vmem>>, vector<1x128xf32>
    %26 = vector.broadcast %25 : vector<1x128xf32> to vector<16x128xf32>
    %27 = arith.addf %24, %26 : vector<16x128xf32>
    %28 = arith.negf %27 : vector<16x128xf32>
    %29 = math.exp %28 : vector<16x128xf32>
    %cst_24 = arith.constant 1.000000e+00 : f32
    %30 = vector.broadcast %cst_24 : f32 to vector<16x128xf32>
    %31 = arith.addf %30, %29 : vector<16x128xf32>
    %32 = arith.divf %30, %31 : vector<16x128xf32>
    %c0_25 = arith.constant 0 : index
    %c0_26 = arith.constant 0 : index
    %33 = vector.load %arg11[%c0_25, %c0_26] : memref<16x128xf32, #tpu.memory_space<vmem>>, vector<16x128xf32>
    tpu.vector_store %arg11[%c0_25, %c0_26], %32 {strides = array<i32>} : memref<16x128xf32, #tpu.memory_space<vmem>>, vector<16x128xf32>,
    return
  }
  func.func @transform_0(%arg0: i32) -> (i32, i32) {
    %c0_i32 = arith.constant 0 : i32
    %c0_i32_0 = arith.constant 0 : i32
    return %arg0, %c0_i32 : i32, i32
  }
  func.func @transform_1(%arg0: i32) -> (i32, i32) {
    %c0_i32 = arith.constant 0 : i32
    %c0_i32_0 = arith.constant 0 : i32
    %c0_i32_1 = arith.constant 0 : i32
    return %c0_i32, %c0_i32_0 : i32, i32
  }
  func.func @transform_2(%arg0: i32) -> (i32, i32) {
    %c0_i32 = arith.constant 0 : i32
    %c0_i32_0 = arith.constant 0 : i32
    %c0_i32_1 = arith.constant 0 : i32
    return %c0_i32, %c0_i32_0 : i32, i32
  }
  func.func @transform_3(%arg0: i32) -> (i32, i32) {
    %c0_i32 = arith.constant 0 : i32
    %c0_i32_0 = arith.constant 0 : i32
    %c0_i32_1 = arith.constant 0 : i32
    return %c0_i32, %c0_i32_0 : i32, i32
  }
  func.func @transform_4(%arg0: i32) -> (i32, i32) {
    %c0_i32 = arith.constant 0 : i32
    %c0_i32_0 = arith.constant 0 : i32
    %c0_i32_1 = arith.constant 0 : i32
    return %c0_i32, %c0_i32_0 : i32, i32
  }
  func.func @transform_5(%arg0: i32) -> (i32, i32) {
    %c0_i32 = arith.constant 0 : i32
    %c0_i32_0 = arith.constant 0 : i32
    %c0_i32_1 = arith.constant 0 : i32
    return %c0_i32, %c0_i32_0 : i32, i32
  }
  func.func @transform_6(%arg0: i32) -> (i32, i32) {
    %c0_i32 = arith.constant 0 : i32
    %c0_i32_0 = arith.constant 0 : i32
    %c0_i32_1 = arith.constant 0 : i32
    return %c0_i32, %c0_i32_0 : i32, i32
  }
  func.func @transform_7(%arg0: i32) -> (i32, i32) {
    %c0_i32 = arith.constant 0 : i32
    %c0_i32_0 = arith.constant 0 : i32
    %c0_i32_1 = arith.constant 0 : i32
    return %c0_i32, %c0_i32_0 : i32, i32
  }
  func.func @transform_8(%arg0: i32) -> (i32, i32) {
    %c0_i32 = arith.constant 0 : i32
    %c0_i32_0 = arith.constant 0 : i32
    %c0_i32_1 = arith.constant 0 : i32
    return %c0_i32, %c0_i32_0 : i32, i32
  }
  func.func @transform_9(%arg0: i32) -> (i32, i32) {
    %c0_i32 = arith.constant 0 : i32
    %c0_i32_0 = arith.constant 0 : i32
    return %arg0, %c0_i32 : i32, i32
  }
  func.func @transform_10(%arg0: i32) -> (i32, i32) {
    %c0_i32 = arith.constant 0 : i32
    %c0_i32_0 = arith.constant 0 : i32
    return %arg0, %c0_i32 : i32, i32
  }
}

</mosaic_0001>

<llo_original>
// kernel: tpu_custom_call.1
$region0: #{tpu_custom_call.1}
  #allocation0 [shape = 'u32[]', space=smem, size = 0x4, offset = 0x4, fixed_abs, tag = 'smem constant byte address 0x4 - core index']
  #allocation1 [shape = 'u32[144,128]{1,0:T(1,128)}', space=vmem, size = 0x12000, scoped, tag = 'internal scratch']
  %s0 = inlined_call_operand.hbm [shape: bf16[32,32], index: 0, kind: input, shape index: {}]
  %s1 = inlined_call_operand.hbm [shape: bf16[32,128], index: 1, kind: input, shape index: {}]
  %s2 = inlined_call_operand.vmem [shape: f32[1,128], index: 2, kind: input, shape index: {}]
  %s3 = inlined_call_operand.hbm [shape: bf16[32,32], index: 3, kind: input, shape index: {}]
  %s4 = inlined_call_operand.vmem [shape: f32[1,32], index: 4, kind: input, shape index: {}]
  %s5 = inlined_call_operand.vmem [shape: bf16[32,32], index: 5, kind: input, shape index: {}]
  %s6 = inlined_call_operand.vmem [shape: f32[1,32], index: 6, kind: input, shape index: {}]
  %s7 = inlined_call_operand.hbm [shape: bf16[32,128], index: 7, kind: input, shape index: {}]
  %s8 = inlined_call_operand.vmem [shape: f32[1,128], index: 8, kind: input, shape index: {}]
  %s9 = inlined_call_operand.hbm [shape: f32[32,128], index: 9, kind: output, shape index: {0}]
  %s10 = inlined_call_operand.hbm [shape: f32[32,128], index: 10, kind: output, shape index: {1}]
  %11 = xla_tuple %s9, %s10
  %s12 = sld [smem:[#allocation0]]
  $region93: #{tpu_custom_call.1} parent=0
    _
  %s14 = ssub.s32 1, %s12
  %s15 = scalar_select 0, %s14, %s12
  $region1: #{tpu_custom_call.1} parent=0
    #allocation2 [shape = 'u8[8192]{0}', space=vmem, size = 0x2000, scoped, tag = 'input window, operand 0']
    #allocation3 [shape = 's32[2]{0}', space=sflag, size = 0x8, scoped, tag = 'scoped memory for tpu_custom_call.1']
    #allocation4 [shape = 's32[2]{0}', space=sflag, size = 0x8, scoped, tag = 'scoped memory for tpu_custom_call.1']
    #allocation5 [shape = 'u8[8192]{0}', space=vmem, size = 0x2000, scoped, tag = 'input window, operand 1, single buffered']
    #allocation6 [shape = 's32[1]{0}', space=sflag, size = 0x4, scoped, tag = 'scoped memory for tpu_custom_call.1']
    #allocation7 [shape = 'u8[8192]{0}', space=vmem, size = 0x2000, scoped, tag = 'input window, operand 3, single buffered']
    #allocation8 [shape = 'u8[8192]{0}', space=vmem, size = 0x2000, scoped, tag = 'input window, operand 7, single buffered']
    #allocation9 [shape = 's32[1]{0}', space=sflag, size = 0x4, scoped, tag = 'scoped memory for tpu_custom_call.1']
    #allocation10 [shape = 'u8[16384]{0}', space=vmem, size = 0x4000, scoped, tag = 'output window, operand 0']
    #allocation11 [shape = 'u8[16384]{0}', space=vmem, size = 0x4000, scoped, tag = 'output window, operand 1']
    #allocation12 [shape = 's32[2]{0}', space=sflag, size = 0x8, scoped, tag = 'scoped memory for tpu_custom_call.1']
    %16 = vsyncpa [#allocation3], 0
    %s17 = scalar_lea.sflag [#allocation3], 1
    %18 = vsyncpa %s17, 0
    %19 = vsyncpa [#allocation6], 0
    %20 = vsyncpa [#allocation9], 0
    %21 = vsyncpa [#allocation4], 0
    %s22 = scalar_lea.sflag [#allocation4], 1
    %23 = vsyncpa %s22, 0
    %24 = vsyncpa [#allocation12], 0
    %s25 = scalar_lea.sflag [#allocation12], 1
    %26 = vsyncpa %s25, 0
    loop: start=0, step=1, limit=4
    $region2: #{tpu_custom_call.1} parent=1 // loop_pre_header
      _
    $region3: #{tpu_custom_call.1} parent=1 // loop_header
      %s28 = sphi 0, %s32
      %p29 = scmp.ge.s32.totalorder %s28, 4
      %s38 = sphi 0, %s40
      %s41 = sphi 0, %s38
      %s42 = sphi 0, %s41
      %s58 = sphi 0, %s42
      %s62 = sphi 0, %s62
      %s64 = sphi 0, %s62
      %s65 = sphi 0, %s64
      %s79 = sphi 0, %s65
      %s83 = sphi 0, %s83
      %s85 = sphi 0, %s83
      %s86 = sphi 0, %s85
      %s100 = sphi 0, %s86
      %s104 = sphi 0, %s104
      %s106 = sphi 0, %s104
      %s107 = sphi 0, %s106
      %s121 = sphi 0, %s107
      %s125 = sphi 0, %s125
      %s127 = sphi 0, %s125
      %s128 = sphi 0, %s127
      %s142 = sphi 0, %s128
      %s146 = sphi 0, %s146
      %s148 = sphi 0, %s146
      %s149 = sphi 0, %s148
      %s163 = sphi 0, %s149
      %s167 = sphi 0, %s167
      %s169 = sphi 0, %s167
      %s170 = sphi 0, %s169
      %s184 = sphi 0, %s170
      %s188 = sphi 0, %s188
      %s190 = sphi 0, %s188
      %s191 = sphi 0, %s190
      %s205 = sphi 0, %s191
      %s209 = sphi 0, %s209
      %s211 = sphi 0, %s209
      %s212 = sphi 0, %s211
      %s226 = sphi 0, %s212
      %s232 = sphi 0, %s234
      %s235 = sphi 0, %s232
      %s236 = sphi 0, %s235
      %s252 = sphi 0, %s236
      %s258 = sphi 0, %s260
      %s261 = sphi 0, %s258
      %s262 = sphi 0, %s261
      %s278 = sphi 0, %s262
    $region4: #{tpu_custom_call.1} parent=1 // loop_header_branch
      %31 = sbr.rel (%p29) target = $region8
    $region5: #{tpu_custom_call.1} parent=1 // loop_body
      %s33 = ssub.s32 %s28, 1
      %s34 = ssub.s32 %s28, 2
      %s35 = sadd.s32 %s28, 1
      %s36 = ssub.s32 %s28, %s35
      %p37 = scmp.eq.s32.totalorder %s36, 0
      %s39 = sadd.s32 %s38, 1
      %s40 = scalar_select %p37, %s38, %s39
      %p43 = pneg %p37
      %p44 = scmp.eq.s32.totalorder %s28, 1
      %p45 = por %p43, %p44
      %p46 = scmp.ne.s32.totalorder %s38, %s41
      %p47 = scmp.eq.s32.totalorder %s28, 0
      %p48 = por %p46, %p47
      %p49 = scmp.ne.s32.totalorder %s38, %s41
      %p50 = scmp.eq.s32.totalorder %s33, 1
      %p51 = por %p49, %p50
      %p52 = scmp.ne.s32.totalorder %s41, %s42
      %p53 = scmp.eq.s32.totalorder %s33, 0
      %p54 = por %p52, %p53
      %p55 = scmp.ne.s32.totalorder %s41, %s42
      %p56 = scmp.eq.s32.totalorder %s34, 1
      %p57 = por %p55, %p56
      %p59 = scmp.ne.s32.totalorder %s42, %s58
      %p60 = scmp.eq.s32.totalorder %s34, 0
      %p61 = por %p59, %p60
      %s63 = sadd.s32 %s62, 1
      %p66 = scmp.eq.s32.totalorder %s28, 1
      %p67 = scmp.ne.s32.totalorder %s62, %s64
      %p68 = scmp.eq.s32.totalorder %s28, 0
      %p69 = por %p67, %p68
      %p70 = scmp.ne.s32.totalorder %s62, %s64
      %p71 = scmp.eq.s32.totalorder %s33, 1
      %p72 = por %p70, %p71
      %p73 = scmp.ne.s32.totalorder %s64, %s65
      %p74 = scmp.eq.s32.totalorder %s33, 0
      %p75 = por %p73, %p74
      %p76 = scmp.ne.s32.totalorder %s64, %s65
      %p77 = scmp.eq.s32.totalorder %s34, 1
      %p78 = por %p76, %p77
      %p80 = scmp.ne.s32.totalorder %s65, %s79
      %p81 = scmp.eq.s32.totalorder %s34, 0
      %p82 = por %p80, %p81
      %s84 = sadd.s32 %s83, 1
      %p87 = scmp.eq.s32.totalorder %s28, 1
      %p88 = scmp.ne.s32.totalorder %s83, %s85
      %p89 = scmp.eq.s32.totalorder %s28, 0
      %p90 = por %p88, %p89
      %p91 = scmp.ne.s32.totalorder %s83, %s85
      %p92 = scmp.eq.s32.totalorder %s33, 1
      %p93 = por %p91, %p92
      %p94 = scmp.ne.s32.totalorder %s85, %s86
      %p95 = scmp.eq.s32.totalorder %s33, 0
      %p96 = por %p94, %p95
      %p97 = scmp.ne.s32.totalorder %s85, %s86
      %p98 = scmp.eq.s32.totalorder %s34, 1
      %p99 = por %p97, %p98
      %p101 = scmp.ne.s32.totalorder %s86, %s100
      %p102 = scmp.eq.s32.totalorder %s34, 0
      %p103 = por %p101, %p102
      %s105 = sadd.s32 %s104, 1
      %p108 = scmp.eq.s32.totalorder %s28, 1
      %p109 = scmp.ne.s32.totalorder %s104, %s106
      %p110 = scmp.eq.s32.totalorder %s28, 0
      %p111 = por %p109, %p110
      %p112 = scmp.ne.s32.totalorder %s104, %s106
      %p113 = scmp.eq.s32.totalorder %s33, 1
      %p114 = por %p112, %p113
      %p115 = scmp.ne.s32.totalorder %s106, %s107
      %p116 = scmp.eq.s32.totalorder %s33, 0
      %p117 = por %p115, %p116
      %p118 = scmp.ne.s32.totalorder %s106, %s107
      %p119 = scmp.eq.s32.totalorder %s34, 1
      %p120 = por %p118, %p119
      %p122 = scmp.ne.s32.totalorder %s107, %s121
      %p123 = scmp.eq.s32.totalorder %s34, 0
      %p124 = por %p122, %p123
      %s126 = sadd.s32 %s125, 1
      %p129 = scmp.eq.s32.totalorder %s28, 1
      %p130 = scmp.ne.s32.totalorder %s125, %s127
      %p131 = scmp.eq.s32.totalorder %s28, 0
      %p132 = por %p130, %p131
      %p133 = scmp.ne.s32.totalorder %s125, %s127
      %p134 = scmp.eq.s32.totalorder %s33, 1
      %p135 = por %p133, %p134
      %p136 = scmp.ne.s32.totalorder %s127, %s128
      %p137 = scmp.eq.s32.totalorder %s33, 0
      %p138 = por %p136, %p137
      %p139 = scmp.ne.s32.totalorder %s127, %s128
      %p140 = scmp.eq.s32.totalorder %s34, 1
      %p141 = por %p139, %p140
      %p143 = scmp.ne.s32.totalorder %s128, %s142
      %p144 = scmp.eq.s32.totalorder %s34, 0
      %p145 = por %p143, %p144
      %s147 = sadd.s32 %s146, 1
      %p150 = scmp.eq.s32.totalorder %s28, 1
      %p151 = scmp.ne.s32.totalorder %s146, %s148
      %p152 = scmp.eq.s32.totalorder %s28, 0
      %p153 = por %p151, %p152
      %p154 = scmp.ne.s32.totalorder %s146, %s148
      %p155 = scmp.eq.s32.totalorder %s33, 1
      %p156 = por %p154, %p155
      %p157 = scmp.ne.s32.totalorder %s148, %s149
      %p158 = scmp.eq.s32.totalorder %s33, 0
      %p159 = por %p157, %p158
      %p160 = scmp.ne.s32.totalorder %s148, %s149
      %p161 = scmp.eq.s32.totalorder %s34, 1
      %p162 = por %p160, %p161
      %p164 = scmp.ne.s32.totalorder %s149, %s163
      %p165 = scmp.eq.s32.totalorder %s34, 0
      %p166 = por %p164, %p165
      %s168 = sadd.s32 %s167, 1
      %p171 = scmp.eq.s32.totalorder %s28, 1
      %p172 = scmp.ne.s32.totalorder %s167, %s169
      %p173 = scmp.eq.s32.totalorder %s28, 0
      %p174 = por %p172, %p173
      %p175 = scmp.ne.s32.totalorder %s167, %s169
      %p176 = scmp.eq.s32.totalorder %s33, 1
      %p177 = por %p175, %p176
      %p178 = scmp.ne.s32.totalorder %s169, %s170
      %p179 = scmp.eq.s32.totalorder %s33, 0
      %p180 = por %p178, %p179
      %p181 = scmp.ne.s32.totalorder %s169, %s170
      %p182 = scmp.eq.s32.totalorder %s34, 1
      %p183 = por %p181, %p182
      %p185 = scmp.ne.s32.totalorder %s170, %s184
      %p186 = scmp.eq.s32.totalorder %s34, 0
      %p187 = por %p185, %p186
      %s189 = sadd.s32 %s188, 1
      %p192 = scmp.eq.s32.totalorder %s28, 1
      %p193 = scmp.ne.s32.totalorder %s188, %s190
      %p194 = scmp.eq.s32.totalorder %s28, 0
      %p195 = por %p193, %p194
      %p196 = scmp.ne.s32.totalorder %s188, %s190
      %p197 = scmp.eq.s32.totalorder %s33, 1
      %p198 = por %p196, %p197
      %p199 = scmp.ne.s32.totalorder %s190, %s191
      %p200 = scmp.eq.s32.totalorder %s33, 0
      %p201 = por %p199, %p200
      %p202 = scmp.ne.s32.totalorder %s190, %s191
      %p203 = scmp.eq.s32.totalorder %s34, 1
      %p204 = por %p202, %p203
      %p206 = scmp.ne.s32.totalorder %s191, %s205
      %p207 = scmp.eq.s32.totalorder %s34, 0
      %p208 = por %p206, %p207
      %s210 = sadd.s32 %s209, 1
      %p213 = scmp.eq.s32.totalorder %s28, 1
      %p214 = scmp.ne.s32.totalorder %s209, %s211
      %p215 = scmp.eq.s32.totalorder %s28, 0
      %p216 = por %p214, %p215
      %p217 = scmp.ne.s32.totalorder %s209, %s211
      %p218 = scmp.eq.s32.totalorder %s33, 1
      %p219 = por %p217, %p218
      %p220 = scmp.ne.s32.totalorder %s211, %s212
      %p221 = scmp.eq.s32.totalorder %s33, 0
      %p222 = por %p220, %p221
      %p223 = scmp.ne.s32.totalorder %s211, %s212
      %p224 = scmp.eq.s32.totalorder %s34, 1
      %p225 = por %p223, %p224
      %p227 = scmp.ne.s32.totalorder %s212, %s226
      %p228 = scmp.eq.s32.totalorder %s34, 0
      %p229 = por %p227, %p228
      %s230 = ssub.s32 %s28, %s35
      %p231 = scmp.eq.s32.totalorder %s230, 0
      %s233 = sadd.s32 %s232, 1
      %s234 = scalar_select %p231, %s232, %s233
      %p237 = pneg %p231
      %p238 = scmp.eq.s32.totalorder %s28, 1
      %p239 = por %p237, %p238
      %p240 = scmp.ne.s32.totalorder %s232, %s235
      %p241 = scmp.eq.s32.totalorder %s28, 0
      %p242 = por %p240, %p241
      %p243 = scmp.ne.s32.totalorder %s232, %s235
      %p244 = scmp.eq.s32.totalorder %s33, 1
      %p245 = por %p243, %p244
      %p246 = scmp.ne.s32.totalorder %s235, %s236
      %p247 = scmp.eq.s32.totalorder %s33, 0
      %p248 = por %p246, %p247
      %p249 = scmp.ne.s32.totalorder %s235, %s236
      %p250 = scmp.eq.s32.totalorder %s34, 1
      %p251 = por %p249, %p250
      %p253 = scmp.ne.s32.totalorder %s236, %s252
      %p254 = scmp.eq.s32.totalorder %s34, 0
      %p255 = por %p253, %p254
      %s256 = ssub.s32 %s28, %s35
      %p257 = scmp.eq.s32.totalorder %s256, 0
      %s259 = sadd.s32 %s258, 1
      %s260 = scalar_select %p257, %s258, %s259
      %p263 = pneg %p257
      %p264 = scmp.eq.s32.totalorder %s28, 1
      %p265 = por %p263, %p264
      %p266 = scmp.ne.s32.totalorder %s258, %s261
      %p267 = scmp.eq.s32.totalorder %s28, 0
      %p268 = por %p266, %p267
      %p269 = scmp.ne.s32.totalorder %s258, %s261
      %p270 = scmp.eq.s32.totalorder %s33, 1
      %p271 = por %p269, %p270
      %p272 = scmp.ne.s32.totalorder %s261, %s262
      %p273 = scmp.eq.s32.totalorder %s33, 0
      %p274 = por %p272, %p273
      %p275 = scmp.ne.s32.totalorder %s261, %s262
      %p276 = scmp.eq.s32.totalorder %s34, 1
      %p277 = por %p275, %p276
      %p279 = scmp.ne.s32.totalorder %s262, %s278
      %p280 = scmp.eq.s32.totalorder %s34, 0
      %p281 = por %p279, %p280
      %p282 = scmp.le.s32.totalorder 1, %s28
      %p283 = scmp.lt.s32.totalorder %s28, 3
      %p284 = pnand %p282, %p283
      %p285 = pneg %p284
      // Predicated region
      $region9: #{tpu_custom_call.1} parent=5 // pred_check
        _
      $region10: #{tpu_custom_call.1} parent=5 // pred_check_branch
        %287 = sbr.rel (%p284) target = $region12
      $region11: #{tpu_custom_call.1} parent=5 // pred_region
        %s288 = ssub.s32 %s28, 1
        // Predicated region
        $region13: #{tpu_custom_call.1} parent=11 // pred_check
          %p289 = pneg %p75
        $region14: #{tpu_custom_call.1} parent=11 // pred_check_branch
          %291 = sbr.rel (%p289) target = $region16
        $region15: #{tpu_custom_call.1} parent=11 // pred_region
          %s293 = ssub.s32 256, 256
          %294 = vsyncadd [#allocation6], %s293
          %s295 = sshll.u32 [#allocation5], 4
          %s296 = int_to_ptr.vmem [resolvable:$true] %s295
          %301 = dma.hbm_to_vmem [thread:$0]  %s1, 256, %s296, [#allocation6], 64, 64, 4
        $region16: #{tpu_custom_call.1} parent=11 // pred_fallthru
          _
        // Predicated region
        $region17: #{tpu_custom_call.1} parent=11 // pred_check
          %p302 = pneg %p96
        $region18: #{tpu_custom_call.1} parent=11 // pred_check_branch
          %304 = sbr.rel (%p302) target = $region20
        $region19: #{tpu_custom_call.1} parent=11 // pred_region
          _
        $region20: #{tpu_custom_call.1} parent=11 // pred_fallthru
          _
        // Predicated region
        $region21: #{tpu_custom_call.1} parent=11 // pred_check
          %p305 = pneg %p117
        $region22: #{tpu_custom_call.1} parent=11 // pred_check_branch
          %307 = sbr.rel (%p305) target = $region24
        $region23: #{tpu_custom_call.1} parent=11 // pred_region
          %s309 = ssub.s32 256, 256
          %310 = vsyncadd [#allocation6], %s309
          %s311 = sshll.u32 [#allocation7], 4
          %s312 = int_to_ptr.vmem [resolvable:$true] %s311
          %317 = dma.hbm_to_vmem [thread:$0]  %s3, 256, %s312, [#allocation6], 64, 64, 4
        $region24: #{tpu_custom_call.1} parent=11 // pred_fallthru
          _
        // Predicated region
        $region25: #{tpu_custom_call.1} parent=11 // pred_check
          %p318 = pneg %p138
        $region26: #{tpu_custom_call.1} parent=11 // pred_check_branch
          %320 = sbr.rel (%p318) target = $region28
        $region27: #{tpu_custom_call.1} parent=11 // pred_region
          _
        $region28: #{tpu_custom_call.1} parent=11 // pred_fallthru
          _
        // Predicated region
        $region29: #{tpu_custom_call.1} parent=11 // pred_check
          %p321 = pneg %p159
        $region30: #{tpu_custom_call.1} parent=11 // pred_check_branch
          %323 = sbr.rel (%p321) target = $region32
        $region31: #{tpu_custom_call.1} parent=11 // pred_region
          _
        $region32: #{tpu_custom_call.1} parent=11 // pred_fallthru
          _
        // Predicated region
        $region33: #{tpu_custom_call.1} parent=11 // pred_check
          %p324 = pneg %p180
        $region34: #{tpu_custom_call.1} parent=11 // pred_check_branch
          %326 = sbr.rel (%p324) target = $region36
        $region35: #{tpu_custom_call.1} parent=11 // pred_region
          _
        $region36: #{tpu_custom_call.1} parent=11 // pred_fallthru
          _
        // Predicated region
        $region37: #{tpu_custom_call.1} parent=11 // pred_check
          %p327 = pneg %p201
        $region38: #{tpu_custom_call.1} parent=11 // pred_check_branch
          %329 = sbr.rel (%p327) target = $region40
        $region39: #{tpu_custom_call.1} parent=11 // pred_region
          %s331 = ssub.s32 256, 256
          %332 = vsyncadd [#allocation9], %s331
          %s333 = sshll.u32 [#allocation8], 4
          %s334 = int_to_ptr.vmem [resolvable:$true] %s333
          %339 = dma.hbm_to_vmem [thread:$0]  %s7, 256, %s334, [#allocation9], 64, 64, 4
        $region40: #{tpu_custom_call.1} parent=11 // pred_fallthru
          _
        // Predicated region
        $region41: #{tpu_custom_call.1} parent=11 // pred_check
          %p340 = pneg %p222
        $region42: #{tpu_custom_call.1} parent=11 // pred_check_branch
          %342 = sbr.rel (%p340) target = $region44
        $region43: #{tpu_custom_call.1} parent=11 // pred_region
          _
        $region44: #{tpu_custom_call.1} parent=11 // pred_fallthru
          _
      $region12: #{tpu_custom_call.1} parent=5 // pred_fallthru
        _
      %p343 = scmp.lt.s32.totalorder %s28, 2
      // Predicated region
      $region45: #{tpu_custom_call.1} parent=5 // pred_check
        %p344 = pneg %p343
      $region46: #{tpu_custom_call.1} parent=5 // pred_check_branch
        %346 = sbr.rel (%p344) target = $region48
      $region47: #{tpu_custom_call.1} parent=5 // pred_region
        // Predicated region
        $region49: #{tpu_custom_call.1} parent=47 // pred_check
          %p347 = pneg %p48
        $region50: #{tpu_custom_call.1} parent=47 // pred_check_branch
          %349 = sbr.rel (%p347) target = $region52
        $region51: #{tpu_custom_call.1} parent=47 // pred_region
          %s350 = sand.u32 %s38, 1
          %s351 = scalar_lea.sflag [#allocation3], %s350
          %s352 = sand.u32 %s38, 1
          %s353 = smul.addr %s352, 8
          %s354 = scalar_lea.vmem [#allocation2], %s353
          %s355 = smul.u32 2, %s28
          %s357 = ssub.s32 128, 128
          %358 = vsyncadd %s351, %s357
          %s359 = smul.addr %s355, 64
          %s360 = scalar_lea.hbm %s0, %s359
          %s361 = sshll.u32 %s354, 4
          %s362 = int_to_ptr.vmem [resolvable:$true] %s361
          %367 = dma.hbm_to_vmem [thread:$0]  %s360, 128, %s362, %s351, 64, 64, 4
        $region52: #{tpu_custom_call.1} parent=47 // pred_fallthru
          _
      $region48: #{tpu_custom_call.1} parent=5 // pred_fallthru
        _
      %p368 = scmp.le.s32.totalorder 1, %s28
      %p369 = scmp.lt.s32.totalorder %s28, 3
      %p370 = pnand %p368, %p369
      %p371 = pneg %p370
      // Predicated region
      $region53: #{tpu_custom_call.1} parent=5 // pred_check
        _
      $region54: #{tpu_custom_call.1} parent=5 // pred_check_branch
        %373 = sbr.rel (%p370) target = $region56
      $region55: #{tpu_custom_call.1} parent=5 // pred_region
        %s374 = ssub.s32 %s28, 1
        %s375 = sand.u32 %s41, 1
        %s376 = scalar_lea.sflag [#allocation3], %s375
        %s377 = sand.u32 %s41, 1
        %s378 = smul.addr %s377, 8
        %s379 = scalar_lea.vmem [#allocation2], %s378
        // Predicated region
        $region57: #{tpu_custom_call.1} parent=55 // pred_check
          %p380 = pneg %p54
        $region58: #{tpu_custom_call.1} parent=55 // pred_check_branch
          %382 = sbr.rel (%p380) target = $region60
        $region59: #{tpu_custom_call.1} parent=55 // pred_region
          %383 = dma.done %s376, 128
        $region60: #{tpu_custom_call.1} parent=55 // pred_fallthru
          _
        // Predicated region
        $region61: #{tpu_custom_call.1} parent=55 // pred_check
          %p384 = pneg %p75
        $region62: #{tpu_custom_call.1} parent=55 // pred_check_branch
          %386 = sbr.rel (%p384) target = $region64
        $region63: #{tpu_custom_call.1} parent=55 // pred_region
          %387 = dma.done [#allocation6], 256
        $region64: #{tpu_custom_call.1} parent=55 // pred_fallthru
          _
        // Predicated region
        $region65: #{tpu_custom_call.1} parent=55 // pred_check
          %p388 = pneg %p117
        $region66: #{tpu_custom_call.1} parent=55 // pred_check_branch
          %390 = sbr.rel (%p388) target = $region68
        $region67: #{tpu_custom_call.1} parent=55 // pred_region
          %391 = dma.done [#allocation6], 256
        $region68: #{tpu_custom_call.1} parent=55 // pred_fallthru
          _
        // Predicated region
        $region69: #{tpu_custom_call.1} parent=55 // pred_check
          %p392 = pneg %p201
        $region70: #{tpu_custom_call.1} parent=55 // pred_check_branch
          %394 = sbr.rel (%p392) target = $region72
        $region71: #{tpu_custom_call.1} parent=55 // pred_region
          %395 = dma.done [#allocation9], 256
        $region72: #{tpu_custom_call.1} parent=55 // pred_fallthru
          _
        %s396 = sand.u32 %s41, 1
        %s397 = scalar_lea.sflag [#allocation3], %s396
        %s398 = sand.u32 %s41, 1
        %s399 = smul.addr %s398, 8
        %s400 = scalar_lea.vmem [#allocation2], %s399
        %p401 = pneg %p54
        %p402 = pneg %p51
        %p403 = pneg %p75
        %p404 = pneg %p72
        %p405 = pneg %p96
        %p406 = pneg %p93
        %p407 = pneg %p117
        %p408 = pneg %p114
        %p409 = pneg %p138
        %p410 = pneg %p135
        %p411 = pneg %p159
        %p412 = pneg %p156
        %p413 = pneg %p180
        %p414 = pneg %p177
        %p415 = pneg %p201
        %p416 = pneg %p198
        %p417 = pneg %p222
        %p418 = pneg %p219
        %p419 = pneg %p248
        %p420 = pneg %p245
        %s421 = sand.u32 %s235, 1
        %s422 = scalar_lea.sflag [#allocation4], %s421
        %s423 = sand.u32 %s235, 1
        %s424 = smul.addr %s423, 16
        %s425 = scalar_lea.vmem [#allocation10], %s424
        %p426 = pneg %p274
        %p427 = pneg %p271
        %s428 = sand.u32 %s261, 1
        %s429 = scalar_lea.sflag [#allocation12], %s428
        %s430 = sand.u32 %s261, 1
        %s431 = smul.addr %s430, 16
        %s432 = scalar_lea.vmem [#allocation11], %s431
        %s433 = smul.u32 2, %s33
        %s434 = smul.u32 2, %s33
        %s435 = smul.u32 2, %s33
        %v437 = vld [vmem:[%s379] sm:$0xf]
        %v438 = vld [vmem:[%s379 + $0x4] sm:$0xf]
        %v439 = vld [vmem:[#allocation5] sm:$0xf]
        %v440 = vld [vmem:[#allocation5 + $0x4] sm:$0xf]
        %v441 = vld [vmem:[#allocation5 + $0x8] sm:$0xf]
        %v442 = vld [vmem:[#allocation5 + $0xc] sm:$0xf]
        %v443 = vld [vmem:[%s2] sm:$0x1]
        %v445 = vlaneseq
        %v446 = vshrl.u32 %v445, 7
        %v447 = vsub.s32 0, %v446
        %v448 = vrot.slane %v443, %v447
        %v452 = vunpack.c.l.b16 %v437
        %v453 = vunpack.c.l.b16 %v438
        %v454 = vpack.c.b16 %v453, %v452
        %v459 = vunpack.c.l.b16 %v439
        %v460 = vunpack.c.l.b16 %v440
        %v461 = vunpack.c.l.b16 %v441
        %v462 = vunpack.c.l.b16 %v442
        %v463 = vpack.c.b16 %v460, %v459
        %v464 = vpack.c.b16 %v462, %v461
        %vm467 = vcmask 261120
        %v469 = vsel %vm467, %v454, 0
        %471 = vmatprep.subr.bf16.mxu0 0
        %472 = vmatpush1.bf16.msra.mxu0 %v463
        %473 = vmatprep.subr.bf16.mxu0 0
        %474 = vmatpush1.bf16.msra.mxu0 %v464
        %475 = vmatprep.subr.bf16.mxu0 0
        %476 = vmatpush1.bf16.msra.mxu0 0
        %477 = vmatprep.subr.bf16.mxu0 0
        %478 = vmatpush1.bf16.msra.mxu0 0
        %479 = vmatprep.subr.bf16.mxu0 0
        %480 = vmatpush1.bf16.msra.mxu0 0
        %481 = vmatprep.subr.bf16.mxu0 0
        %482 = vmatpush1.bf16.msra.mxu0 0
        %483 = vmatprep.subr.bf16.mxu0 0
        %484 = vmatpush1.bf16.msra.mxu0 0
        %485 = vmatprep.subr.bf16.mxu0 0
        %486 = vmatpush1.bf16.msra.mxu0 0
        %487 = vmatprep.subr.bf16.mxu0 0
        %488 = vmatpush1.bf16.msra.mxu0 0
        %489 = vmatprep.subr.bf16.mxu0 0
        %490 = vmatpush1.bf16.msra.mxu0 0
        %491 = vmatprep.subr.bf16.mxu0 0
        %492 = vmatpush1.bf16.msra.mxu0 0
        %493 = vmatprep.subr.bf16.mxu0 0
        %494 = vmatpush1.bf16.msra.mxu0 0
        %495 = vmatprep.subr.bf16.mxu0 0
        %496 = vmatpush1.bf16.msra.mxu0 0
        %497 = vmatprep.subr.bf16.mxu0 0
        %498 = vmatpush1.bf16.msra.mxu0 0
        %499 = vmatprep.subr.bf16.mxu0 0
        %500 = vmatpush1.bf16.msra.mxu0 0
        %501 = vmatprep.subr.bf16.mxu0 0
        %502 = vmatpush1.bf16.msra.mxu0 0
        %503 = vmatprep.mubr.bf16.mxu0 0
        %504 = vmatmul.mubr.bf16.gmra.mrb[0].mxu0 %v469
        %v505 = vpop.f32.mrb[0].mxu0
        %v506 = vadd.f32 %v448, %v505
        %v507 = vpop.f32.mrb[0].mxu0
        %v508 = vpop.f32.mrb[0].mxu0
        %v509 = vadd.f32 %v448, %v508
        %v510 = vpop.f32.mrb[0].mxu0
        %511 = vdwg.mxu0
        %512 = vst [vmem:[%s425] sm:$0xff] %v506
        %513 = vst [vmem:[%s425 + $0x8] sm:$0xff] %v509
        %v514 = vld [vmem:[#allocation7] sm:$0xf]
        %v515 = vld [vmem:[#allocation7 + $0x4] sm:$0xf]
        %v516 = vld [vmem:[#allocation7 + $0x8] sm:$0xf]
        %v517 = vld [vmem:[#allocation7 + $0xc] sm:$0xf]
        %v518 = vld [vmem:[%s4] sm:$0x1]
        %v520 = vlaneseq
        %v521 = vshrl.u32 %v520, 7
        %v522 = vsub.s32 0, %v521
        %v523 = vrot.slane %v518, %v522
        %v529 = vunpack.c.l.b16 %v514
        %v530 = vunpack.c.l.b16 %v515
        %v531 = vunpack.c.l.b16 %v516
        %v532 = vunpack.c.l.b16 %v517
        %v533 = vpack.c.b16 %v530, %v529
        %v534 = vpack.c.b16 %v532, %v531
        %537 = vmatprep.subr.bf16.mxu0 0
        %538 = vmatpush1.bf16.msra.mxu0 %v533
        %539 = vmatprep.subr.bf16.mxu0 0
        %540 = vmatpush1.bf16.msra.mxu0 %v534
        %541 = vmatprep.subr.bf16.mxu0 0
        %542 = vmatpush1.bf16.msra.mxu0 0
        %543 = vmatprep.subr.bf16.mxu0 0
        %544 = vmatpush1.bf16.msra.mxu0 0
        %545 = vmatprep.subr.bf16.mxu0 0
        %546 = vmatpush1.bf16.msra.mxu0 0
        %547 = vmatprep.subr.bf16.mxu0 0
        %548 = vmatpush1.bf16.msra.mxu0 0
        %549 = vmatprep.subr.bf16.mxu0 0
        %550 = vmatpush1.bf16.msra.mxu0 0
        %551 = vmatprep.subr.bf16.mxu0 0
        %552 = vmatpush1.bf16.msra.mxu0 0
        %553 = vmatprep.subr.bf16.mxu0 0
        %554 = vmatpush1.bf16.msra.mxu0 0
        %555 = vmatprep.subr.bf16.mxu0 0
        %556 = vmatpush1.bf16.msra.mxu0 0
        %557 = vmatprep.subr.bf16.mxu0 0
        %558 = vmatpush1.bf16.msra.mxu0 0
        %559 = vmatprep.subr.bf16.mxu0 0
        %560 = vmatpush1.bf16.msra.mxu0 0
        %561 = vmatprep.subr.bf16.mxu0 0
        %562 = vmatpush1.bf16.msra.mxu0 0
        %563 = vmatprep.subr.bf16.mxu0 0
        %564 = vmatpush1.bf16.msra.mxu0 0
        %565 = vmatprep.subr.bf16.mxu0 0
        %566 = vmatpush1.bf16.msra.mxu0 0
        %567 = vmatprep.subr.bf16.mxu0 0
        %568 = vmatpush1.bf16.msra.mxu0 0
        %569 = vmatprep.mubr.bf16.mxu0 0
        %570 = vmatmul.mubr.bf16.gmra.mrb[0].mxu0 %v469
        %v571 = vpop.f32.mrb[0].mxu0
        %v572 = vadd.f32 %v523, %v571
        %v573 = vpop.f32.mrb[0].mxu0
        %v574 = vpop.f32.mrb[0].mxu0
        %v575 = vadd.f32 %v523, %v574
        %v576 = vpop.f32.mrb[0].mxu0
        %577 = vdwg.mxu0
        %v578 = vmax.f32 %v572, 0.0
        %v579 = vmax.f32 %v575, 0.0
        %v580 = vpack.c.bf16 %v579, %v578
        %v581 = vld [vmem:[%s5] sm:$0xf]
        %v582 = vld [vmem:[%s5 + $0x4] sm:$0xf]
        %v583 = vld [vmem:[%s5 + $0x8] sm:$0xf]
        %v584 = vld [vmem:[%s5 + $0xc] sm:$0xf]
        %v585 = vld [vmem:[%s6] sm:$0x1]
        %v587 = vlaneseq
        %v588 = vshrl.u32 %v587, 7
        %v589 = vsub.s32 0, %v588
        %v590 = vrot.slane %v585, %v589
        %v596 = vunpack.c.l.b16 %v581
        %v597 = vunpack.c.l.b16 %v582
        %v598 = vunpack.c.l.b16 %v583
        %v599 = vunpack.c.l.b16 %v584
        %v600 = vpack.c.b16 %v597, %v596
        %v601 = vpack.c.b16 %v599, %v598
        %v605 = vsel %vm467, %v580, 0
        %607 = vmatprep.subr.bf16.mxu0 0
        %608 = vmatpush1.bf16.msra.mxu0 %v600
        %609 = vmatprep.subr.bf16.mxu0 0
        %610 = vmatpush1.bf16.msra.mxu0 %v601
        %611 = vmatprep.subr.bf16.mxu0 0
        %612 = vmatpush1.bf16.msra.mxu0 0
        %613 = vmatprep.subr.bf16.mxu0 0
        %614 = vmatpush1.bf16.msra.mxu0 0
        %615 = vmatprep.subr.bf16.mxu0 0
        %616 = vmatpush1.bf16.msra.mxu0 0
        %617 = vmatprep.subr.bf16.mxu0 0
        %618 = vmatpush1.bf16.msra.mxu0 0
        %619 = vmatprep.subr.bf16.mxu0 0
        %620 = vmatpush1.bf16.msra.mxu0 0
        %621 = vmatprep.subr.bf16.mxu0 0
        %622 = vmatpush1.bf16.msra.mxu0 0
        %623 = vmatprep.subr.bf16.mxu0 0
        %624 = vmatpush1.bf16.msra.mxu0 0
        %625 = vmatprep.subr.bf16.mxu0 0
        %626 = vmatpush1.bf16.msra.mxu0 0
        %627 = vmatprep.subr.bf16.mxu0 0
        %628 = vmatpush1.bf16.msra.mxu0 0
        %629 = vmatprep.subr.bf16.mxu0 0
        %630 = vmatpush1.bf16.msra.mxu0 0
        %631 = vmatprep.subr.bf16.mxu0 0
        %632 = vmatpush1.bf16.msra.mxu0 0
        %633 = vmatprep.subr.bf16.mxu0 0
        %634 = vmatpush1.bf16.msra.mxu0 0
        %635 = vmatprep.subr.bf16.mxu0 0
        %636 = vmatpush1.bf16.msra.mxu0 0
        %637 = vmatprep.subr.bf16.mxu0 0
        %638 = vmatpush1.bf16.msra.mxu0 0
        %639 = vmatprep.mubr.bf16.mxu0 0
        %640 = vmatmul.mubr.bf16.gmra.mrb[0].mxu0 %v605
        %v641 = vpop.f32.mrb[0].mxu0
        %v642 = vadd.f32 %v590, %v641
        %v643 = vpop.f32.mrb[0].mxu0
        %v644 = vpop.f32.mrb[0].mxu0
        %v645 = vadd.f32 %v590, %v644
        %v646 = vpop.f32.mrb[0].mxu0
        %647 = vdwg.mxu0
        %v648 = vmax.f32 %v642, 0.0
        %v649 = vmax.f32 %v645, 0.0
        %v650 = vpack.c.bf16 %v649, %v648
        %v651 = vld [vmem:[#allocation8] sm:$0xf]
        %v652 = vld [vmem:[#allocation8 + $0x4] sm:$0xf]
        %v653 = vld [vmem:[#allocation8 + $0x8] sm:$0xf]
        %v654 = vld [vmem:[#allocation8 + $0xc] sm:$0xf]
        %v655 = vld [vmem:[%s8] sm:$0x1]
        %v657 = vlaneseq
        %v658 = vshrl.u32 %v657, 7
        %v659 = vsub.s32 0, %v658
        %v660 = vrot.slane %v655, %v659
        %v666 = vunpack.c.l.b16 %v651
        %v667 = vunpack.c.l.b16 %v652
        %v668 = vunpack.c.l.b16 %v653
        %v669 = vunpack.c.l.b16 %v654
        %v670 = vpack.c.b16 %v667, %v666
        %v671 = vpack.c.b16 %v669, %v668
        %v675 = vsel %vm467, %v650, 0
        %677 = vmatprep.subr.bf16.mxu0 0
        %678 = vmatpush1.bf16.msra.mxu0 %v670
        %679 = vmatprep.subr.bf16.mxu0 0
        %680 = vmatpush1.bf16.msra.mxu0 %v671
        %681 = vmatprep.subr.bf16.mxu0 0
        %682 = vmatpush1.bf16.msra.mxu0 0
        %683 = vmatprep.subr.bf16.mxu0 0
        %684 = vmatpush1.bf16.msra.mxu0 0
        %685 = vmatprep.subr.bf16.mxu0 0
        %686 = vmatpush1.bf16.msra.mxu0 0
        %687 = vmatprep.subr.bf16.mxu0 0
        %688 = vmatpush1.bf16.msra.mxu0 0
        %689 = vmatprep.subr.bf16.mxu0 0
        %690 = vmatpush1.bf16.msra.mxu0 0
        %691 = vmatprep.subr.bf16.mxu0 0
        %692 = vmatpush1.bf16.msra.mxu0 0
        %693 = vmatprep.subr.bf16.mxu0 0
        %694 = vmatpush1.bf16.msra.mxu0 0
        %695 = vmatprep.subr.bf16.mxu0 0
        %696 = vmatpush1.bf16.msra.mxu0 0
        %697 = vmatprep.subr.bf16.mxu0 0
        %698 = vmatpush1.bf16.msra.mxu0 0
        %699 = vmatprep.subr.bf16.mxu0 0
        %700 = vmatpush1.bf16.msra.mxu0 0
        %701 = vmatprep.subr.bf16.mxu0 0
        %702 = vmatpush1.bf16.msra.mxu0 0
        %703 = vmatprep.subr.bf16.mxu0 0
        %704 = vmatpush1.bf16.msra.mxu0 0
        %705 = vmatprep.subr.bf16.mxu0 0
        %706 = vmatpush1.bf16.msra.mxu0 0
        %707 = vmatprep.subr.bf16.mxu0 0
        %708 = vmatpush1.bf16.msra.mxu0 0
        %709 = vmatprep.mubr.bf16.mxu0 0
        %710 = vmatmul.mubr.bf16.gmra.mrb[0].mxu0 %v675
        %v711 = vpop.f32.mrb[0].mxu0
        %v712 = vadd.f32 %v660, %v711
        %v713 = vpop.f32.mrb[0].mxu0
        %v714 = vpop.f32.mrb[0].mxu0
        %v715 = vadd.f32 %v660, %v714
        %v716 = vpop.f32.mrb[0].mxu0
        %717 = vdwg.mxu0
        %v718 = vxor.u32 %v712, 2147483648
        %v719 = vxor.u32 %v715, 2147483648
        %v720 = vmul.f32 %v718, 1.442695
        %v721 = vpow.pop %v720
        %v722 = vmul.f32 %v719, 1.442695
        %v723 = vpow.pop %v722
        %v724 = vadd.f32 %v721, 1.0
        %v725 = vadd.f32 %v723, 1.0
        %v726 = vrcp.pop %v724
        %v727 = vmul.f32 1.0, %v726
        %v728 = vrcp.pop %v725
        %v729 = vmul.f32 1.0, %v728
        %730 = vst [vmem:[%s432] sm:$0xff] %v727
        %731 = vst [vmem:[%s432 + $0x8] sm:$0xff] %v729
        %s732 = sand.u32 %s235, 1
        %s733 = scalar_lea.sflag [#allocation4], %s732
        %s734 = sand.u32 %s235, 1
        %s735 = smul.addr %s734, 16
        %s736 = scalar_lea.vmem [#allocation10], %s735
        %s737 = sand.u32 %s261, 1
        %s738 = scalar_lea.sflag [#allocation12], %s737
        %s739 = sand.u32 %s261, 1
        %s740 = smul.addr %s739, 16
        %s741 = scalar_lea.vmem [#allocation11], %s740
        // Predicated region
        $region73: #{tpu_custom_call.1} parent=55 // pred_check
          %p742 = pneg %p245
        $region74: #{tpu_custom_call.1} parent=55 // pred_check_branch
          %744 = sbr.rel (%p742) target = $region76
        $region75: #{tpu_custom_call.1} parent=55 // pred_region
          %s745 = smul.u32 2, %s33
          %s747 = ssub.s32 256, 256
          %748 = vsyncadd %s733, %s747
          %s749 = smul.addr %s745, 128
          %s750 = scalar_lea.hbm %s9, %s749
          %s751 = sshll.u32 %s736, 4
          %s752 = int_to_ptr.vmem [resolvable:$true] %s751
          %757 = dma.vmem_to_hbm [thread:$0]  %s752, 256, %s750, %s733, 128, 128, 8
        $region76: #{tpu_custom_call.1} parent=55 // pred_fallthru
          _
        // Predicated region
        $region77: #{tpu_custom_call.1} parent=55 // pred_check
          %p758 = pneg %p271
        $region78: #{tpu_custom_call.1} parent=55 // pred_check_branch
          %760 = sbr.rel (%p758) target = $region80
        $region79: #{tpu_custom_call.1} parent=55 // pred_region
          %s761 = smul.u32 2, %s33
          %s763 = ssub.s32 256, 256
          %764 = vsyncadd %s738, %s763
          %s765 = smul.addr %s761, 128
          %s766 = scalar_lea.hbm %s10, %s765
          %s767 = sshll.u32 %s741, 4
          %s768 = int_to_ptr.vmem [resolvable:$true] %s767
          %773 = dma.vmem_to_hbm [thread:$0]  %s768, 256, %s766, %s738, 128, 128, 8
        $region80: #{tpu_custom_call.1} parent=55 // pred_fallthru
          _
      $region56: #{tpu_custom_call.1} parent=5 // pred_fallthru
        _
      %p774 = scmp.le.s32.totalorder 2, %s28
      // Predicated region
      $region81: #{tpu_custom_call.1} parent=5 // pred_check
        %p775 = pneg %p774
      $region82: #{tpu_custom_call.1} parent=5 // pred_check_branch
        %777 = sbr.rel (%p775) target = $region84
      $region83: #{tpu_custom_call.1} parent=5 // pred_region
        %s778 = ssub.s32 %s28, 2
        // Predicated region
        $region85: #{tpu_custom_call.1} parent=83 // pred_check
          %p779 = pneg %p251
        $region86: #{tpu_custom_call.1} parent=83 // pred_check_branch
          %781 = sbr.rel (%p779) target = $region88
        $region87: #{tpu_custom_call.1} parent=83 // pred_region
          %s782 = sand.u32 %s236, 1
          %s783 = scalar_lea.sflag [#allocation4], %s782
          %s784 = sand.u32 %s236, 1
          %s785 = smul.addr %s784, 16
          %s786 = scalar_lea.vmem [#allocation10], %s785
          %787 = dma.done %s783, 256
        $region88: #{tpu_custom_call.1} parent=83 // pred_fallthru
          _
        // Predicated region
        $region89: #{tpu_custom_call.1} parent=83 // pred_check
          %p788 = pneg %p277
        $region90: #{tpu_custom_call.1} parent=83 // pred_check_branch
          %790 = sbr.rel (%p788) target = $region92
        $region91: #{tpu_custom_call.1} parent=83 // pred_region
          %s791 = sand.u32 %s262, 1
          %s792 = scalar_lea.sflag [#allocation12], %s791
          %s793 = sand.u32 %s262, 1
          %s794 = smul.addr %s793, 16
          %s795 = scalar_lea.vmem [#allocation11], %s794
          %796 = dma.done %s792, 256
        $region92: #{tpu_custom_call.1} parent=83 // pred_fallthru
          _
      $region84: #{tpu_custom_call.1} parent=5 // pred_fallthru
        _
    $region6: #{tpu_custom_call.1} parent=1 // loop_footer
      %s32 = sadd.s32 1, %s28
    $region7: #{tpu_custom_call.1} parent=1 // loop_footer_branch
      %27 = sbr.rel target = $region3
    $region8: #{tpu_custom_call.1} parent=1 // loop_exit
      _
    %797 = vsyncpa [#allocation3], 1
    %s798 = scalar_lea.sflag [#allocation3], 1
    %799 = vsyncpa %s798, 1
    %800 = vsyncpa [#allocation6], 1
    %801 = vsyncpa [#allocation9], 1
    %802 = vsyncpa [#allocation4], 1
    %s803 = scalar_lea.sflag [#allocation4], 1
    %804 = vsyncpa %s803, 1
    %805 = vsyncpa [#allocation12], 1
    %s806 = scalar_lea.sflag [#allocation12], 1
    %807 = vsyncpa %s806, 1

</llo_original>
